<compile_context>
chip_gen: v7x
topology: tpu7x:2x2x1
jax: 0.10.0
libtpu: 0.0.40
codegen_flags: <defaults>
</compile_context>

<pallas_src>
import jax
import jax.numpy as jnp
from jax.experimental import pallas as pl
from jax.experimental.pallas import tpu as pltpu

HIDDEN = 128
DOUT = 2
DOUT_PAD = 128  # lane-dense padded output width


def multi_input_kernel(x1_ref, x2_ref,
                       w1_ref, b1_ref,
                       w2_ref, b2_ref,
                       w3a_ref, w3b_ref, b3_ref,
                       out_ref):
    # Cast activations to bf16 in-kernel (VPU has slack; avoids a wrapper-side
    # HBM round trip), MXU matmuls accumulate in f32.
    x1 = x1_ref[...].astype(jnp.bfloat16)
    x2 = x2_ref[...].astype(jnp.bfloat16)

    # branch 1: Linear(784 -> 128)
    h1 = jnp.dot(x1, w1_ref[...], preferred_element_type=jnp.float32) + b1_ref[...]
    # branch 2: Linear(784 -> 128)
    h2 = jnp.dot(x2, w2_ref[...], preferred_element_type=jnp.float32) + b2_ref[...]

    # Linear(256 -> 2) on concat([h1, h2]) == h1 @ w3[:128] + h2 @ w3[128:]
    # (w3a/w3b/b3 are zero-padded to 128 output lanes -> unmasked, lane-dense
    #  stores; the wrapper slices the first 2 columns.)
    out = (jnp.dot(h1.astype(jnp.bfloat16), w3a_ref[...],
                   preferred_element_type=jnp.float32)
           + jnp.dot(h2.astype(jnp.bfloat16), w3b_ref[...],
                     preferred_element_type=jnp.float32)
           + b3_ref[...])
    out_ref[...] = out.astype(out_ref.dtype)


def prepare_params(params):
    """One-time prep: transpose-free bf16 weights + lane-padded last layer."""
    w1, b1, w2, b2, w3, b3 = params
    H = HIDDEN

    # Split the last layer so the kernel never concatenates, and zero-pad its
    # output dim from 2 -> 128 for lane-dense stores.
    w3a = jnp.zeros((H, DOUT_PAD), jnp.float32).at[:, :DOUT].set(w3[:H, :])
    w3b = jnp.zeros((H, DOUT_PAD), jnp.float32).at[:, :DOUT].set(w3[H:, :])
    b3p = jnp.zeros((1, DOUT_PAD), jnp.float32).at[:, :DOUT].set(b3)

    cdt = jnp.bfloat16
    return (w1.astype(cdt), b1,
            w2.astype(cdt), b2,
            w3a.astype(cdt), w3b.astype(cdt), b3p)


def _choose_tile(B, tile_b):
    """Batch tile: multiple of 8, capped at tile_b, >=2 grid steps for big B."""
    if B <= 256:
        return B                      # full-batch block (full-dim is always legal)
    half = -(-B // 2)                 # cdiv(B, 2) -> at least 2 grid steps (v7x)
    half = ((half + 7) // 8) * 8      # keep the (8, 128) block constraint
    return min(tile_b, half)


def multi_input_model(x1, x2, prepared, tile_b=1024):
    """x1, x2: (B, 784) float32. prepared = prepare_params(params).
    Returns (B, 2) float32."""
    w1c, b1, w2c, b2, w3ac, w3bc, b3p = prepared
    B, Din = x1.shape
    H = HIDDEN

    TB = _choose_tile(B, tile_b)
    grid = (pl.cdiv(B, TB),)

    out_padded = pl.pallas_call(
        multi_input_kernel,
        out_shape=jax.ShapeDtypeStruct((B, DOUT_PAD), jnp.float32),
        grid=grid,
        in_specs=[
            # activations: tiled along batch (f32, cast in-kernel)
            pl.BlockSpec((TB, Din), lambda i: (i, 0)),
            pl.BlockSpec((TB, Din), lambda i: (i, 0)),
            # weights / biases: constant block index -> loaded once, resident
            pl.BlockSpec((Din, H), lambda i: (0, 0)),
            pl.BlockSpec((1, H), lambda i: (0, 0)),
            pl.BlockSpec((Din, H), lambda i: (0, 0)),
            pl.BlockSpec((1, H), lambda i: (0, 0)),
            pl.BlockSpec((H, DOUT_PAD), lambda i: (0, 0)),
            pl.BlockSpec((H, DOUT_PAD), lambda i: (0, 0)),
            pl.BlockSpec((1, DOUT_PAD), lambda i: (0, 0)),
        ],
        out_specs=pl.BlockSpec((TB, DOUT_PAD), lambda i: (i, 0)),
        compiler_params=pltpu.CompilerParams(
            dimension_semantics=("parallel",),
            # TB=1024 f32 activations (double-buffered) + weights + padded out
            # ~= 16-17 MiB; raise the scoped limit so v5e (16 MiB default) fits.
            vmem_limit_bytes=32 << 20,
        ),
    )(x1, x2, w1c, b1, w2c, b2, w3ac, w3bc, b3p)

    return out_padded[:, :DOUT]


def init_params(key):
    # Deterministic synthetic init (PyTorch-style uniform(-1/sqrt(fan_in), +)).
    k1, k2, k3, k4, k5, k6 = jax.random.split(key, 6)
    in1, h, cat, out = 28 * 28, HIDDEN, 2 * HIDDEN, DOUT

    def uni(k, shape, fan_in):
        bound = 1.0 / jnp.sqrt(fan_in)
        return jax.random.uniform(k, shape, jnp.float32, -bound, bound)

    w1 = uni(k1, (in1, h), in1)       # layer_1.weight.T
    b1 = uni(k2, (1, h), in1)         # layer_1.bias
    w2 = uni(k3, (in1, h), in1)       # layer_2.weight.T
    b2 = uni(k4, (1, h), in1)         # layer_2.bias
    w3 = uni(k5, (cat, out), cat)     # layer_3.weight.T
    b3 = uni(k6, (1, out), cat)       # layer_3.bias
    return (w1, b1, w2, b2, w3, b3)


def reference_f32(x1, x2, params):
    w1, b1, w2, b2, w3, b3 = params
    h1 = x1 @ w1 + b1
    h2 = x2 @ w2 + b2
    return jnp.concatenate([h1, h2], axis=1) @ w3 + b3


def reference_bf16(x1, x2, params):
    # Same math as the kernel (bf16 matmul operands, f32 accumulation).
    w1, b1, w2, b2, w3, b3 = params
    c = lambda a: a.astype(jnp.bfloat16)
    h1 = jnp.dot(c(x1), c(w1), preferred_element_type=jnp.float32) + b1
    h2 = jnp.dot(c(x2), c(w2), preferred_element_type=jnp.float32) + b2
    return (jnp.dot(c(h1), c(w3[:HIDDEN, :]), preferred_element_type=jnp.float32)
            + jnp.dot(c(h2), c(w3[HIDDEN:, :]), preferred_element_type=jnp.float32)
            + b3)


if __name__ == "__main__":
    key = jax.random.PRNGKey(0)
    kp, kx1, kx2, ky1, ky2 = jax.random.split(key, 5)
    params = init_params(kp)
    prepared = prepare_params(params)

    # --- small batch (single grid step) ---
    B = 8
    x1 = jax.random.normal(kx1, (B, 28 * 28), jnp.float32)
    x2 = jax.random.normal(kx2, (B, 28 * 28), jnp.float32)

    out = jax.block_until_ready(multi_input_model(x1, x2, prepared))
    assert out.shape == (B, DOUT)
    assert jnp.allclose(out, reference_bf16(x1, x2, params), atol=2e-3, rtol=2e-3)
    assert jnp.allclose(out, reference_f32(x1, x2, params), atol=5e-2, rtol=5e-2)

    # --- larger batch (multi-step grid with a ragged last tile) ---
    B2 = 300
    y1 = jax.random.normal(ky1, (B2, 28 * 28), jnp.float32)
    y2 = jax.random.normal(ky2, (B2, 28 * 28), jnp.float32)

    out2 = jax.block_until_ready(multi_input_model(y1, y2, prepared))
    assert out2.shape == (B2, DOUT)
    assert jnp.allclose(out2, reference_bf16(y1, y2, params), atol=2e-3, rtol=2e-3)
    assert jnp.allclose(out2, reference_f32(y1, y2, params), atol=5e-2, rtol=5e-2)

    print("KERNEL_OK")
</pallas_src>

<mosaic_0001>
module attributes {stable_mosaic.version = 11 : i64} {
  func.func @multi_input_kernel(%arg0: i32, %arg1: memref<8x784xf32, #tpu.memory_space<vmem>>, %arg2: memref<8x784xf32, #tpu.memory_space<vmem>>, %arg3: memref<784x128xbf16, #tpu.memory_space<vmem>>, %arg4: memref<1x128xf32, #tpu.memory_space<vmem>>, %arg5: memref<784x128xbf16, #tpu.memory_space<vmem>>, %arg6: memref<1x128xf32, #tpu.memory_space<vmem>>, %arg7: memref<128x128xbf16, #tpu.memory_space<vmem>>, %arg8: memref<128x128xbf16, #tpu.memory_space<vmem>>, %arg9: memref<1x128xf32, #tpu.memory_space<vmem>>, %arg10: memref<8x128xf32, #tpu.memory_space<vmem>>) attributes {dimension_semantics = [#tpu.dimension_semantics<parallel>], iteration_bounds = array<i64: 1>, scalar_prefetch = 0 : i64, scratch_operands = 0 : i64, tpu.core_type = #tpu.core_type<tc>, window_params = [{transform_indices = @transform_0, window_bounds = array<i64: 8, 784>}, {transform_indices = @transform_1, window_bounds = array<i64: 8, 784>}, {pipeline_mode = #tpu.pipeline_mode<synchronous>, transform_indices = @transform_2, window_bounds = array<i64: 784, 128>}, {pipeline_mode = #tpu.pipeline_mode<synchronous>, transform_indices = @transform_3, window_bounds = array<i64: 1, 128>}, {pipeline_mode = #tpu.pipeline_mode<synchronous>, transform_indices = @transform_4, window_bounds = array<i64: 784, 128>}, {pipeline_mode = #tpu.pipeline_mode<synchronous>, transform_indices = @transform_5, window_bounds = array<i64: 1, 128>}, {pipeline_mode = #tpu.pipeline_mode<synchronous>, transform_indices = @transform_6, window_bounds = array<i64: 128, 128>}, {pipeline_mode = #tpu.pipeline_mode<synchronous>, transform_indices = @transform_7, window_bounds = array<i64: 128, 128>}, {pipeline_mode = #tpu.pipeline_mode<synchronous>, transform_indices = @transform_8, window_bounds = array<i64: 1, 128>}, {transform_indices = @transform_9, window_bounds = array<i64: 8, 128>}]} {
    %c0 = arith.constant 0 : index
    %c0_0 = arith.constant 0 : index
    %0 = vector.load %arg1[%c0, %c0_0] : memref<8x784xf32, #tpu.memory_space<vmem>>, vector<8x784xf32>
    %1 = arith.truncf %0 : vector<8x784xf32> to vector<8x784xbf16>
    %c0_1 = arith.constant 0 : index
    %c0_2 = arith.constant 0 : index
    %2 = vector.load %arg2[%c0_1, %c0_2] : memref<8x784xf32, #tpu.memory_space<vmem>>, vector<8x784xf32>
    %3 = arith.truncf %2 : vector<8x784xf32> to vector<8x784xbf16>
    %c0_3 = arith.constant 0 : index
    %c0_4 = arith.constant 0 : index
    %4 = vector.load %arg3[%c0_3, %c0_4] : memref<784x128xbf16, #tpu.memory_space<vmem>>, vector<784x128xbf16>
    %cst = arith.constant dense<0.000000e+00> : vector<8x128xf32>
    %5 = tpu.matmul %1, %4, %cst {dimension_numbers = #tpu.dot_dimension_numbers<[1], [0], [0], [1], [0, 0, 1, 1], [], []>} : vector<8x784xbf16>, vector<784x128xbf16>, vector<8x128xf32> -> vector<8x128xf32>
    %c0_5 = arith.constant 0 : index
    %c0_6 = arith.constant 0 : index
    %6 = vector.load %arg4[%c0_5, %c0_6] : memref<1x128xf32, #tpu.memory_space<vmem>>, vector<1x128xf32>
    %7 = vector.broadcast %6 : vector<1x128xf32> to vector<8x128xf32>
    %8 = arith.addf %5, %7 : vector<8x128xf32>
    %c0_7 = arith.constant 0 : index
    %c0_8 = arith.constant 0 : index
    %9 = vector.load %arg5[%c0_7, %c0_8] : memref<784x128xbf16, #tpu.memory_space<vmem>>, vector<784x128xbf16>
    %cst_9 = arith.constant dense<0.000000e+00> : vector<8x128xf32>
    %10 = tpu.matmul %3, %9, %cst_9 {dimension_numbers = #tpu.dot_dimension_numbers<[1], [0], [0], [1], [0, 0, 1, 1], [], []>} : vector<8x784xbf16>, vector<784x128xbf16>, vector<8x128xf32> -> vector<8x128xf32>
    %c0_10 = arith.constant 0 : index
    %c0_11 = arith.constant 0 : index
    %11 = vector.load %arg6[%c0_10, %c0_11] : memref<1x128xf32, #tpu.memory_space<vmem>>, vector<1x128xf32>
    %12 = vector.broadcast %11 : vector<1x128xf32> to vector<8x128xf32>
    %13 = arith.addf %10, %12 : vector<8x128xf32>
    %14 = arith.truncf %8 : vector<8x128xf32> to vector<8x128xbf16>
    %c0_12 = arith.constant 0 : index
    %c0_13 = arith.constant 0 : index
    %15 = vector.load %arg7[%c0_12, %c0_13] : memref<128x128xbf16, #tpu.memory_space<vmem>>, vector<128x128xbf16>
    %cst_14 = arith.constant dense<0.000000e+00> : vector<8x128xf32>
    %16 = tpu.matmul %14, %15, %cst_14 {dimension_numbers = #tpu.dot_dimension_numbers<[1], [0], [0], [1], [0, 0, 1, 1], [], []>} : vector<8x128xbf16>, vector<128x128xbf16>, vector<8x128xf32> -> vector<8x128xf32>
    %17 = arith.truncf %13 : vector<8x128xf32> to vector<8x128xbf16>
    %c0_15 = arith.constant 0 : index
    %c0_16 = arith.constant 0 : index
    %18 = vector.load %arg8[%c0_15, %c0_16] : memref<128x128xbf16, #tpu.memory_space<vmem>>, vector<128x128xbf16>
    %cst_17 = arith.constant dense<0.000000e+00> : vector<8x128xf32>
    %19 = tpu.matmul %17, %18, %cst_17 {dimension_numbers = #tpu.dot_dimension_numbers<[1], [0], [0], [1], [0, 0, 1, 1], [], []>} : vector<8x128xbf16>, vector<128x128xbf16>, vector<8x128xf32> -> vector<8x128xf32>
    %20 = arith.addf %16, %19 : vector<8x128xf32>
    %c0_18 = arith.constant 0 : index
    %c0_19 = arith.constant 0 : index
    %21 = vector.load %arg9[%c0_18, %c0_19] : memref<1x128xf32, #tpu.memory_space<vmem>>, vector<1x128xf32>
    %22 = vector.broadcast %21 : vector<1x128xf32> to vector<8x128xf32>
    %23 = arith.addf %20, %22 : vector<8x128xf32>
    %c0_20 = arith.constant 0 : index
    %c0_21 = arith.constant 0 : index
    %24 = vector.load %arg10[%c0_20, %c0_21] : memref<8x128xf32, #tpu.memory_space<vmem>>, vector<8x128xf32>
    tpu.vector_store %arg10[%c0_20, %c0_21], %23 {strides = array<i32>} : memref<8x128xf32, #tpu.memory_space<vmem>>, vector<8x128xf32>,
    return
  }
  func.func @transform_0(%arg0: i32) -> (i32, i32) {
    %c0_i32 = arith.constant 0 : i32
    %c0_i32_0 = arith.constant 0 : i32
    return %arg0, %c0_i32 : i32, i32
  }
  func.func @transform_1(%arg0: i32) -> (i32, i32) {
    %c0_i32 = arith.constant 0 : i32
    %c0_i32_0 = arith.constant 0 : i32
    return %arg0, %c0_i32 : i32, i32
  }
  func.func @transform_2(%arg0: i32) -> (i32, i32) {
    %c0_i32 = arith.constant 0 : i32
    %c0_i32_0 = arith.constant 0 : i32
    %c0_i32_1 = arith.constant 0 : i32
    return %c0_i32, %c0_i32_0 : i32, i32
  }
  func.func @transform_3(%arg0: i32) -> (i32, i32) {
    %c0_i32 = arith.constant 0 : i32
    %c0_i32_0 = arith.constant 0 : i32
    %c0_i32_1 = arith.constant 0 : i32
    return %c0_i32, %c0_i32_0 : i32, i32
  }
  func.func @transform_4(%arg0: i32) -> (i32, i32) {
    %c0_i32 = arith.constant 0 : i32
    %c0_i32_0 = arith.constant 0 : i32
    %c0_i32_1 = arith.constant 0 : i32
    return %c0_i32, %c0_i32_0 : i32, i32
  }
  func.func @transform_5(%arg0: i32) -> (i32, i32) {
    %c0_i32 = arith.constant 0 : i32
    %c0_i32_0 = arith.constant 0 : i32
    %c0_i32_1 = arith.constant 0 : i32
    return %c0_i32, %c0_i32_0 : i32, i32
  }
  func.func @transform_6(%arg0: i32) -> (i32, i32) {
    %c0_i32 = arith.constant 0 : i32
    %c0_i32_0 = arith.constant 0 : i32
    %c0_i32_1 = arith.constant 0 : i32
    return %c0_i32, %c0_i32_0 : i32, i32
  }
  func.func @transform_7(%arg0: i32) -> (i32, i32) {
    %c0_i32 = arith.constant 0 : i32
    %c0_i32_0 = arith.constant 0 : i32
    %c0_i32_1 = arith.constant 0 : i32
    return %c0_i32, %c0_i32_0 : i32, i32
  }
  func.func @transform_8(%arg0: i32) -> (i32, i32) {
    %c0_i32 = arith.constant 0 : i32
    %c0_i32_0 = arith.constant 0 : i32
    %c0_i32_1 = arith.constant 0 : i32
    return %c0_i32, %c0_i32_0 : i32, i32
  }
  func.func @transform_9(%arg0: i32) -> (i32, i32) {
    %c0_i32 = arith.constant 0 : i32
    %c0_i32_0 = arith.constant 0 : i32
    return %arg0, %c0_i32 : i32, i32
  }
}

</mosaic_0001>

<llo_original>
// kernel: tpu_custom_call.1
$region0: #{tpu_custom_call.1}
  #allocation0 [shape = 'u32[]', space=smem, size = 0x4, offset = 0x4, fixed_abs, tag = 'smem constant byte address 0x4 - core index']
  #allocation1 [shape = 'u32[144,128]{1,0:T(1,128)}', space=vmem, size = 0x12000, scoped, tag = 'internal scratch']
  %s0 = inlined_call_operand.hbm [shape: f32[8,784], index: 0, kind: input, shape index: {}]
  %s1 = inlined_call_operand.hbm [shape: f32[8,784], index: 1, kind: input, shape index: {}]
  %s2 = inlined_call_operand.hbm [shape: bf16[784,128], index: 2, kind: input, shape index: {}]
  %s3 = inlined_call_operand.vmem [shape: f32[1,128], index: 3, kind: input, shape index: {}]
  %s4 = inlined_call_operand.hbm [shape: bf16[784,128], index: 4, kind: input, shape index: {}]
  %s5 = inlined_call_operand.vmem [shape: f32[1,128], index: 5, kind: input, shape index: {}]
  %s6 = inlined_call_operand.hbm [shape: bf16[128,128], index: 6, kind: input, shape index: {}]
  %s7 = inlined_call_operand.hbm [shape: bf16[128,128], index: 7, kind: input, shape index: {}]
  %s8 = inlined_call_operand.vmem [shape: f32[1,128], index: 8, kind: input, shape index: {}]
  %s9 = inlined_call_operand.hbm [shape: f32[8,128], index: 9, kind: output, shape index: {}]
  %s10 = sld [smem:[#allocation0]]
  $region70: #{tpu_custom_call.1} parent=0
    _
  %s12 = ssub.s32 1, %s10
  %s13 = scalar_select 0, %s12, %s10
  $region1: #{tpu_custom_call.1} parent=0
    #allocation2 [shape = 'u8[28672]{0}', space=vmem, size = 0x7000, scoped, tag = 'input window, operand 0, single buffered']
    #allocation3 [shape = 's32[1]{0}', space=sflag, size = 0x4, scoped, tag = 'scoped memory for tpu_custom_call.1']
    #allocation4 [shape = 's32[1]{0}', space=sflag, size = 0x4, scoped, tag = 'scoped memory for tpu_custom_call.1']
    #allocation5 [shape = 'u8[28672]{0}', space=vmem, size = 0x7000, scoped, tag = 'input window, operand 1, single buffered']
    #allocation6 [shape = 's32[1]{0}', space=sflag, size = 0x4, scoped, tag = 'scoped memory for tpu_custom_call.1']
    #allocation7 [shape = 'u8[200704]{0}', space=vmem, size = 0x31000, scoped, tag = 'input window, operand 2, single buffered']
    #allocation8 [shape = 'u8[200704]{0}', space=vmem, size = 0x31000, scoped, tag = 'input window, operand 4, single buffered']
    #allocation9 [shape = 's32[1]{0}', space=sflag, size = 0x4, scoped, tag = 'scoped memory for tpu_custom_call.1']
    #allocation10 [shape = 'u8[32768]{0}', space=vmem, size = 0x8000, scoped, tag = 'input window, operand 6, single buffered']
    #allocation11 [shape = 'u8[32768]{0}', space=vmem, size = 0x8000, scoped, tag = 'input window, operand 7, single buffered']
    #allocation12 [shape = 's32[1]{0}', space=sflag, size = 0x4, scoped, tag = 'scoped memory for tpu_custom_call.1']
    #allocation13 [shape = 'u8[4096]{0}', space=vmem, size = 0x1000, scoped, tag = 'output window, operand 0, single buffered']
    %14 = vsyncpa [#allocation3], 0
    %15 = vsyncpa [#allocation6], 0
    %16 = vsyncpa [#allocation9], 0
    %17 = vsyncpa [#allocation12], 0
    %18 = vsyncpa [#allocation4], 0
    // Predicated region
    $region2: #{tpu_custom_call.1} parent=1 // pred_check
      _
    $region3: #{tpu_custom_call.1} parent=1 // pred_check_branch
      %20 = sbr.rel (0) target = $region5
    $region4: #{tpu_custom_call.1} parent=1 // pred_region
      %s22 = ssub.s32 896, 896
      %23 = vsyncadd [#allocation3], %s22
      %s25 = sshll.u32 [#allocation2], 4
      %s26 = int_to_ptr.vmem [resolvable:$true] %s25
      %28 = dma.hbm_to_vmem [thread:$0]  %s0, 896, %s26, [#allocation3]
    $region5: #{tpu_custom_call.1} parent=1 // pred_fallthru
      _
    // Predicated region
    $region6: #{tpu_custom_call.1} parent=1 // pred_check
      _
    $region7: #{tpu_custom_call.1} parent=1 // pred_check_branch
      %30 = sbr.rel (0) target = $region9
    $region8: #{tpu_custom_call.1} parent=1 // pred_region
      %s32 = ssub.s32 896, 896
      %33 = vsyncadd [#allocation6], %s32
      %s35 = sshll.u32 [#allocation5], 4
      %s36 = int_to_ptr.vmem [resolvable:$true] %s35
      %38 = dma.hbm_to_vmem [thread:$0]  %s1, 896, %s36, [#allocation6]
    $region9: #{tpu_custom_call.1} parent=1 // pred_fallthru
      _
    // Predicated region
    $region10: #{tpu_custom_call.1} parent=1 // pred_check
      _
    $region11: #{tpu_custom_call.1} parent=1 // pred_check_branch
      %40 = sbr.rel (0) target = $region13
    $region12: #{tpu_custom_call.1} parent=1 // pred_region
      %s42 = ssub.s32 6272, 6272
      %43 = vsyncadd [#allocation6], %s42
      %s44 = sshll.u32 [#allocation7], 4
      %s45 = int_to_ptr.vmem [resolvable:$true] %s44
      %50 = dma.hbm_to_vmem [thread:$0]  %s2, 6272, %s45, [#allocation6], 64, 64, 4
    $region13: #{tpu_custom_call.1} parent=1 // pred_fallthru
      _
    // Predicated region
    $region14: #{tpu_custom_call.1} parent=1 // pred_check
      _
    $region15: #{tpu_custom_call.1} parent=1 // pred_check_branch
      %52 = sbr.rel (0) target = $region17
    $region16: #{tpu_custom_call.1} parent=1 // pred_region
      _
    $region17: #{tpu_custom_call.1} parent=1 // pred_fallthru
      _
    // Predicated region
    $region18: #{tpu_custom_call.1} parent=1 // pred_check
      _
    $region19: #{tpu_custom_call.1} parent=1 // pred_check_branch
      %54 = sbr.rel (0) target = $region21
    $region20: #{tpu_custom_call.1} parent=1 // pred_region
      %s56 = ssub.s32 6272, 6272
      %57 = vsyncadd [#allocation9], %s56
      %s58 = sshll.u32 [#allocation8], 4
      %s59 = int_to_ptr.vmem [resolvable:$true] %s58
      %64 = dma.hbm_to_vmem [thread:$0]  %s4, 6272, %s59, [#allocation9], 64, 64, 4
    $region21: #{tpu_custom_call.1} parent=1 // pred_fallthru
      _
    // Predicated region
    $region22: #{tpu_custom_call.1} parent=1 // pred_check
      _
    $region23: #{tpu_custom_call.1} parent=1 // pred_check_branch
      %66 = sbr.rel (0) target = $region25
    $region24: #{tpu_custom_call.1} parent=1 // pred_region
      _
    $region25: #{tpu_custom_call.1} parent=1 // pred_fallthru
      _
    // Predicated region
    $region26: #{tpu_custom_call.1} parent=1 // pred_check
      _
    $region27: #{tpu_custom_call.1} parent=1 // pred_check_branch
      %68 = sbr.rel (0) target = $region29
    $region28: #{tpu_custom_call.1} parent=1 // pred_region
      %s70 = ssub.s32 1024, 1024
      %71 = vsyncadd [#allocation9], %s70
      %s72 = sshll.u32 [#allocation10], 4
      %s73 = int_to_ptr.vmem [resolvable:$true] %s72
      %78 = dma.hbm_to_vmem [thread:$0]  %s6, 1024, %s73, [#allocation9], 64, 64, 4
    $region29: #{tpu_custom_call.1} parent=1 // pred_fallthru
      _
    // Predicated region
    $region30: #{tpu_custom_call.1} parent=1 // pred_check
      _
    $region31: #{tpu_custom_call.1} parent=1 // pred_check_branch
      %80 = sbr.rel (0) target = $region33
    $region32: #{tpu_custom_call.1} parent=1 // pred_region
      %s82 = ssub.s32 1024, 1024
      %83 = vsyncadd [#allocation12], %s82
      %s84 = sshll.u32 [#allocation11], 4
      %s85 = int_to_ptr.vmem [resolvable:$true] %s84
      %90 = dma.hbm_to_vmem [thread:$0]  %s7, 1024, %s85, [#allocation12], 64, 64, 4
    $region33: #{tpu_custom_call.1} parent=1 // pred_fallthru
      _
    // Predicated region
    $region34: #{tpu_custom_call.1} parent=1 // pred_check
      _
    $region35: #{tpu_custom_call.1} parent=1 // pred_check_branch
      %92 = sbr.rel (0) target = $region37
    $region36: #{tpu_custom_call.1} parent=1 // pred_region
      _
    $region37: #{tpu_custom_call.1} parent=1 // pred_fallthru
      _
    // Predicated region
    $region38: #{tpu_custom_call.1} parent=1 // pred_check
      _
    $region39: #{tpu_custom_call.1} parent=1 // pred_check_branch
      %94 = sbr.rel (0) target = $region41
    $region40: #{tpu_custom_call.1} parent=1 // pred_region
      %95 = dma.done [#allocation3], 896
    $region41: #{tpu_custom_call.1} parent=1 // pred_fallthru
      _
    // Predicated region
    $region42: #{tpu_custom_call.1} parent=1 // pred_check
      _
    $region43: #{tpu_custom_call.1} parent=1 // pred_check_branch
      %97 = sbr.rel (0) target = $region45
    $region44: #{tpu_custom_call.1} parent=1 // pred_region
      %98 = dma.done [#allocation6], 896
    $region45: #{tpu_custom_call.1} parent=1 // pred_fallthru
      _
    // Predicated region
    $region46: #{tpu_custom_call.1} parent=1 // pred_check
      _
    $region47: #{tpu_custom_call.1} parent=1 // pred_check_branch
      %100 = sbr.rel (0) target = $region49
    $region48: #{tpu_custom_call.1} parent=1 // pred_region
      %101 = dma.done [#allocation6], 6272
    $region49: #{tpu_custom_call.1} parent=1 // pred_fallthru
      _
    // Predicated region
    $region50: #{tpu_custom_call.1} parent=1 // pred_check
      _
    $region51: #{tpu_custom_call.1} parent=1 // pred_check_branch
      %103 = sbr.rel (0) target = $region53
    $region52: #{tpu_custom_call.1} parent=1 // pred_region
      %104 = dma.done [#allocation9], 6272
    $region53: #{tpu_custom_call.1} parent=1 // pred_fallthru
      _
    // Predicated region
    $region54: #{tpu_custom_call.1} parent=1 // pred_check
      _
    $region55: #{tpu_custom_call.1} parent=1 // pred_check_branch
      %106 = sbr.rel (0) target = $region57
    $region56: #{tpu_custom_call.1} parent=1 // pred_region
      %107 = dma.done [#allocation9], 1024
    $region57: #{tpu_custom_call.1} parent=1 // pred_fallthru
      _
    // Predicated region
    $region58: #{tpu_custom_call.1} parent=1 // pred_check
      _
    $region59: #{tpu_custom_call.1} parent=1 // pred_check_branch
      %109 = sbr.rel (0) target = $region61
    $region60: #{tpu_custom_call.1} parent=1 // pred_region
      %110 = dma.done [#allocation12], 1024
    $region61: #{tpu_custom_call.1} parent=1 // pred_fallthru
      _
    %v112 = vld [vmem:[#allocation2] sm:$0xff]
    %v113 = vld [vmem:[#allocation2 + $0x8] sm:$0xff]
    %v114 = vld [vmem:[#allocation2 + $0x10] sm:$0xff]
    %v115 = vld [vmem:[#allocation2 + $0x18] sm:$0xff]
    %v116 = vld [vmem:[#allocation2 + $0x20] sm:$0xff]
    %v117 = vld [vmem:[#allocation2 + $0x28] sm:$0xff]
    %v118 = vld [vmem:[#allocation2 + $0x30] sm:$0xff]
    %v119 = vpack.c.bf16 %v112, %v112
    %v120 = vpack.c.bf16 %v113, %v113
    %v121 = vpack.c.bf16 %v114, %v114
    %v122 = vpack.c.bf16 %v115, %v115
    %v123 = vpack.c.bf16 %v116, %v116
    %v124 = vpack.c.bf16 %v117, %v117
    %v125 = vpack.c.bf16 %v118, %v118
    %v126 = vld [vmem:[#allocation5] sm:$0xff]
    %v127 = vld [vmem:[#allocation5 + $0x8] sm:$0xff]
    %v128 = vld [vmem:[#allocation5 + $0x10] sm:$0xff]
    %v129 = vld [vmem:[#allocation5 + $0x18] sm:$0xff]
    %v130 = vld [vmem:[#allocation5 + $0x20] sm:$0xff]
    %v131 = vld [vmem:[#allocation5 + $0x28] sm:$0xff]
    %v132 = vld [vmem:[#allocation5 + $0x30] sm:$0xff]
    %v133 = vpack.c.bf16 %v126, %v126
    %v134 = vpack.c.bf16 %v127, %v127
    %v135 = vpack.c.bf16 %v128, %v128
    %v136 = vpack.c.bf16 %v129, %v129
    %v137 = vpack.c.bf16 %v130, %v130
    %v138 = vpack.c.bf16 %v131, %v131
    %v139 = vpack.c.bf16 %v132, %v132
    %v140 = vld [vmem:[#allocation7] sm:$0xf]
    %v141 = vld [vmem:[#allocation7 + $0x4] sm:$0xf]
    %v142 = vld [vmem:[#allocation7 + $0x8] sm:$0xf]
    %v143 = vld [vmem:[#allocation7 + $0xc] sm:$0xf]
    %v144 = vld [vmem:[#allocation7 + $0x10] sm:$0xf]
    %v145 = vld [vmem:[#allocation7 + $0x14] sm:$0xf]
    %v146 = vld [vmem:[#allocation7 + $0x18] sm:$0xf]
    %v147 = vld [vmem:[#allocation7 + $0x1c] sm:$0xf]
    %v148 = vld [vmem:[#allocation7 + $0x20] sm:$0xf]
    %v149 = vld [vmem:[#allocation7 + $0x24] sm:$0xf]
    %v150 = vld [vmem:[#allocation7 + $0x28] sm:$0xf]
    %v151 = vld [vmem:[#allocation7 + $0x2c] sm:$0xf]
    %v152 = vld [vmem:[#allocation7 + $0x30] sm:$0xf]
    %v153 = vld [vmem:[#allocation7 + $0x34] sm:$0xf]
    %v154 = vld [vmem:[#allocation7 + $0x38] sm:$0xf]
    %v155 = vld [vmem:[#allocation7 + $0x3c] sm:$0xf]
    %v156 = vld [vmem:[#allocation7 + $0x40] sm:$0xf]
    %v157 = vld [vmem:[#allocation7 + $0x44] sm:$0xf]
    %v158 = vld [vmem:[#allocation7 + $0x48] sm:$0xf]
    %v159 = vld [vmem:[#allocation7 + $0x4c] sm:$0xf]
    %v160 = vld [vmem:[#allocation7 + $0x50] sm:$0xf]
    %v161 = vld [vmem:[#allocation7 + $0x54] sm:$0xf]
    %v162 = vld [vmem:[#allocation7 + $0x58] sm:$0xf]
    %v163 = vld [vmem:[#allocation7 + $0x5c] sm:$0xf]
    %v164 = vld [vmem:[#allocation7 + $0x60] sm:$0xf]
    %v165 = vld [vmem:[#allocation7 + $0x64] sm:$0xf]
    %v166 = vld [vmem:[#allocation7 + $0x68] sm:$0xf]
    %v167 = vld [vmem:[#allocation7 + $0x6c] sm:$0xf]
    %v168 = vld [vmem:[#allocation7 + $0x70] sm:$0xf]
    %v169 = vld [vmem:[#allocation7 + $0x74] sm:$0xf]
    %v170 = vld [vmem:[#allocation7 + $0x78] sm:$0xf]
    %v171 = vld [vmem:[#allocation7 + $0x7c] sm:$0xf]
    %v172 = vld [vmem:[#allocation7 + $0x80] sm:$0xf]
    %v173 = vld [vmem:[#allocation7 + $0x84] sm:$0xf]
    %v174 = vld [vmem:[#allocation7 + $0x88] sm:$0xf]
    %v175 = vld [vmem:[#allocation7 + $0x8c] sm:$0xf]
    %v176 = vld [vmem:[#allocation7 + $0x90] sm:$0xf]
    %v177 = vld [vmem:[#allocation7 + $0x94] sm:$0xf]
    %v178 = vld [vmem:[#allocation7 + $0x98] sm:$0xf]
    %v179 = vld [vmem:[#allocation7 + $0x9c] sm:$0xf]
    %v180 = vld [vmem:[#allocation7 + $0xa0] sm:$0xf]
    %v181 = vld [vmem:[#allocation7 + $0xa4] sm:$0xf]
    %v182 = vld [vmem:[#allocation7 + $0xa8] sm:$0xf]
    %v183 = vld [vmem:[#allocation7 + $0xac] sm:$0xf]
    %v184 = vld [vmem:[#allocation7 + $0xb0] sm:$0xf]
    %v185 = vld [vmem:[#allocation7 + $0xb4] sm:$0xf]
    %v186 = vld [vmem:[#allocation7 + $0xb8] sm:$0xf]
    %v187 = vld [vmem:[#allocation7 + $0xbc] sm:$0xf]
    %v188 = vld [vmem:[#allocation7 + $0xc0] sm:$0xf]
    %v189 = vld [vmem:[#allocation7 + $0xc4] sm:$0xf]
    %v190 = vld [vmem:[#allocation7 + $0xc8] sm:$0xf]
    %v191 = vld [vmem:[#allocation7 + $0xcc] sm:$0xf]
    %v192 = vld [vmem:[#allocation7 + $0xd0] sm:$0xf]
    %v193 = vld [vmem:[#allocation7 + $0xd4] sm:$0xf]
    %v194 = vld [vmem:[#allocation7 + $0xd8] sm:$0xf]
    %v195 = vld [vmem:[#allocation7 + $0xdc] sm:$0xf]
    %v196 = vld [vmem:[#allocation7 + $0xe0] sm:$0xf]
    %v197 = vld [vmem:[#allocation7 + $0xe4] sm:$0xf]
    %v198 = vld [vmem:[#allocation7 + $0xe8] sm:$0xf]
    %v199 = vld [vmem:[#allocation7 + $0xec] sm:$0xf]
    %v200 = vld [vmem:[#allocation7 + $0xf0] sm:$0xf]
    %v201 = vld [vmem:[#allocation7 + $0xf4] sm:$0xf]
    %v202 = vld [vmem:[#allocation7 + $0xf8] sm:$0xf]
    %v203 = vld [vmem:[#allocation7 + $0xfc] sm:$0xf]
    %v204 = vld [vmem:[#allocation7 + $0x100] sm:$0xf]
    %v205 = vld [vmem:[#allocation7 + $0x104] sm:$0xf]
    %v206 = vld [vmem:[#allocation7 + $0x108] sm:$0xf]
    %v207 = vld [vmem:[#allocation7 + $0x10c] sm:$0xf]
    %v208 = vld [vmem:[#allocation7 + $0x110] sm:$0xf]
    %v209 = vld [vmem:[#allocation7 + $0x114] sm:$0xf]
    %v210 = vld [vmem:[#allocation7 + $0x118] sm:$0xf]
    %v211 = vld [vmem:[#allocation7 + $0x11c] sm:$0xf]
    %v212 = vld [vmem:[#allocation7 + $0x120] sm:$0xf]
    %v213 = vld [vmem:[#allocation7 + $0x124] sm:$0xf]
    %v214 = vld [vmem:[#allocation7 + $0x128] sm:$0xf]
    %v215 = vld [vmem:[#allocation7 + $0x12c] sm:$0xf]
    %v216 = vld [vmem:[#allocation7 + $0x130] sm:$0xf]
    %v217 = vld [vmem:[#allocation7 + $0x134] sm:$0xf]
    %v218 = vld [vmem:[#allocation7 + $0x138] sm:$0xf]
    %v219 = vld [vmem:[#allocation7 + $0x13c] sm:$0xf]
    %v220 = vld [vmem:[#allocation7 + $0x140] sm:$0xf]
    %v221 = vld [vmem:[#allocation7 + $0x144] sm:$0xf]
    %v222 = vld [vmem:[#allocation7 + $0x148] sm:$0xf]
    %v223 = vld [vmem:[#allocation7 + $0x14c] sm:$0xf]
    %v224 = vld [vmem:[#allocation7 + $0x150] sm:$0xf]
    %v225 = vld [vmem:[#allocation7 + $0x154] sm:$0xf]
    %v226 = vld [vmem:[#allocation7 + $0x158] sm:$0xf]
    %v227 = vld [vmem:[#allocation7 + $0x15c] sm:$0xf]
    %v228 = vld [vmem:[#allocation7 + $0x160] sm:$0xf]
    %v229 = vld [vmem:[#allocation7 + $0x164] sm:$0xf]
    %v230 = vld [vmem:[#allocation7 + $0x168] sm:$0xf]
    %v231 = vld [vmem:[#allocation7 + $0x16c] sm:$0xf]
    %v232 = vld [vmem:[#allocation7 + $0x170] sm:$0xf]
    %v233 = vld [vmem:[#allocation7 + $0x174] sm:$0xf]
    %v234 = vld [vmem:[#allocation7 + $0x178] sm:$0xf]
    %v235 = vld [vmem:[#allocation7 + $0x17c] sm:$0xf]
    %v236 = vld [vmem:[#allocation7 + $0x180] sm:$0xf]
    %v237 = vld [vmem:[#allocation7 + $0x184] sm:$0xf]
    %v238 = vld [vmem:[%s3] sm:$0x1]
    %v240 = vlaneseq
    %v241 = vshrl.u32 %v240, 7
    %v242 = vsub.s32 0, %v241
    %v243 = vrot.slane %v238, %v242
    %v343 = vunpack.c.l.b16 %v140
    %v344 = vunpack.c.l.b16 %v141
    %v345 = vunpack.c.l.b16 %v142
    %v346 = vunpack.c.l.b16 %v143
    %v347 = vunpack.c.l.b16 %v144
    %v348 = vunpack.c.l.b16 %v145
    %v349 = vunpack.c.l.b16 %v146
    %v350 = vunpack.c.l.b16 %v147
    %v351 = vunpack.c.l.b16 %v148
    %v352 = vunpack.c.l.b16 %v149
    %v353 = vunpack.c.l.b16 %v150
    %v354 = vunpack.c.l.b16 %v151
    %v355 = vunpack.c.l.b16 %v152
    %v356 = vunpack.c.l.b16 %v153
    %v357 = vunpack.c.l.b16 %v154
    %v358 = vunpack.c.l.b16 %v155
    %v359 = vunpack.c.l.b16 %v156
    %v360 = vunpack.c.l.b16 %v157
    %v361 = vunpack.c.l.b16 %v158
    %v362 = vunpack.c.l.b16 %v159
    %v363 = vunpack.c.l.b16 %v160
    %v364 = vunpack.c.l.b16 %v161
    %v365 = vunpack.c.l.b16 %v162
    %v366 = vunpack.c.l.b16 %v163
    %v367 = vunpack.c.l.b16 %v164
    %v368 = vunpack.c.l.b16 %v165
    %v369 = vunpack.c.l.b16 %v166
    %v370 = vunpack.c.l.b16 %v167
    %v371 = vunpack.c.l.b16 %v168
    %v372 = vunpack.c.l.b16 %v169
    %v373 = vunpack.c.l.b16 %v170
    %v374 = vunpack.c.l.b16 %v171
    %v375 = vunpack.c.l.b16 %v172
    %v376 = vunpack.c.l.b16 %v173
    %v377 = vunpack.c.l.b16 %v174
    %v378 = vunpack.c.l.b16 %v175
    %v379 = vunpack.c.l.b16 %v176
    %v380 = vunpack.c.l.b16 %v177
    %v381 = vunpack.c.l.b16 %v178
    %v382 = vunpack.c.l.b16 %v179
    %v383 = vunpack.c.l.b16 %v180
    %v384 = vunpack.c.l.b16 %v181
    %v385 = vunpack.c.l.b16 %v182
    %v386 = vunpack.c.l.b16 %v183
    %v387 = vunpack.c.l.b16 %v184
    %v388 = vunpack.c.l.b16 %v185
    %v389 = vunpack.c.l.b16 %v186
    %v390 = vunpack.c.l.b16 %v187
    %v391 = vunpack.c.l.b16 %v188
    %v392 = vunpack.c.l.b16 %v189
    %v393 = vunpack.c.l.b16 %v190
    %v394 = vunpack.c.l.b16 %v191
    %v395 = vunpack.c.l.b16 %v192
    %v396 = vunpack.c.l.b16 %v193
    %v397 = vunpack.c.l.b16 %v194
    %v398 = vunpack.c.l.b16 %v195
    %v399 = vunpack.c.l.b16 %v196
    %v400 = vunpack.c.l.b16 %v197
    %v401 = vunpack.c.l.b16 %v198
    %v402 = vunpack.c.l.b16 %v199
    %v403 = vunpack.c.l.b16 %v200
    %v404 = vunpack.c.l.b16 %v201
    %v405 = vunpack.c.l.b16 %v202
    %v406 = vunpack.c.l.b16 %v203
    %v407 = vunpack.c.l.b16 %v204
    %v408 = vunpack.c.l.b16 %v205
    %v409 = vunpack.c.l.b16 %v206
    %v410 = vunpack.c.l.b16 %v207
    %v411 = vunpack.c.l.b16 %v208
    %v412 = vunpack.c.l.b16 %v209
    %v413 = vunpack.c.l.b16 %v210
    %v414 = vunpack.c.l.b16 %v211
    %v415 = vunpack.c.l.b16 %v212
    %v416 = vunpack.c.l.b16 %v213
    %v417 = vunpack.c.l.b16 %v214
    %v418 = vunpack.c.l.b16 %v215
    %v419 = vunpack.c.l.b16 %v216
    %v420 = vunpack.c.l.b16 %v217
    %v421 = vunpack.c.l.b16 %v218
    %v422 = vunpack.c.l.b16 %v219
    %v423 = vunpack.c.l.b16 %v220
    %v424 = vunpack.c.l.b16 %v221
    %v425 = vunpack.c.l.b16 %v222
    %v426 = vunpack.c.l.b16 %v223
    %v427 = vunpack.c.l.b16 %v224
    %v428 = vunpack.c.l.b16 %v225
    %v429 = vunpack.c.l.b16 %v226
    %v430 = vunpack.c.l.b16 %v227
    %v431 = vunpack.c.l.b16 %v228
    %v432 = vunpack.c.l.b16 %v229
    %v433 = vunpack.c.l.b16 %v230
    %v434 = vunpack.c.l.b16 %v231
    %v435 = vunpack.c.l.b16 %v232
    %v436 = vunpack.c.l.b16 %v233
    %v437 = vunpack.c.l.b16 %v234
    %v438 = vunpack.c.l.b16 %v235
    %v439 = vunpack.c.l.b16 %v236
    %v440 = vunpack.c.l.b16 %v237
    %v441 = vpack.c.b16 %v344, %v343
    %v442 = vpack.c.b16 %v346, %v345
    %v443 = vpack.c.b16 %v348, %v347
    %v444 = vpack.c.b16 %v350, %v349
    %v445 = vpack.c.b16 %v352, %v351
    %v446 = vpack.c.b16 %v354, %v353
    %v447 = vpack.c.b16 %v356, %v355
    %v448 = vpack.c.b16 %v358, %v357
    %v449 = vpack.c.b16 %v360, %v359
    %v450 = vpack.c.b16 %v362, %v361
    %v451 = vpack.c.b16 %v364, %v363
    %v452 = vpack.c.b16 %v366, %v365
    %v453 = vpack.c.b16 %v368, %v367
    %v454 = vpack.c.b16 %v370, %v369
    %v455 = vpack.c.b16 %v372, %v371
    %v456 = vpack.c.b16 %v374, %v373
    %v457 = vpack.c.b16 %v376, %v375
    %v458 = vpack.c.b16 %v378, %v377
    %v459 = vpack.c.b16 %v380, %v379
    %v460 = vpack.c.b16 %v382, %v381
    %v461 = vpack.c.b16 %v384, %v383
    %v462 = vpack.c.b16 %v386, %v385
    %v463 = vpack.c.b16 %v388, %v387
    %v464 = vpack.c.b16 %v390, %v389
    %v465 = vpack.c.b16 %v392, %v391
    %v466 = vpack.c.b16 %v394, %v393
    %v467 = vpack.c.b16 %v396, %v395
    %v468 = vpack.c.b16 %v398, %v397
    %v469 = vpack.c.b16 %v400, %v399
    %v470 = vpack.c.b16 %v402, %v401
    %v471 = vpack.c.b16 %v404, %v403
    %v472 = vpack.c.b16 %v406, %v405
    %v473 = vpack.c.b16 %v408, %v407
    %v474 = vpack.c.b16 %v410, %v409
    %v475 = vpack.c.b16 %v412, %v411
    %v476 = vpack.c.b16 %v414, %v413
    %v477 = vpack.c.b16 %v416, %v415
    %v478 = vpack.c.b16 %v418, %v417
    %v479 = vpack.c.b16 %v420, %v419
    %v480 = vpack.c.b16 %v422, %v421
    %v481 = vpack.c.b16 %v424, %v423
    %v482 = vpack.c.b16 %v426, %v425
    %v483 = vpack.c.b16 %v428, %v427
    %v484 = vpack.c.b16 %v430, %v429
    %v485 = vpack.c.b16 %v432, %v431
    %v486 = vpack.c.b16 %v434, %v433
    %v487 = vpack.c.b16 %v436, %v435
    %v488 = vpack.c.b16 %v438, %v437
    %v489 = vpack.c.b16 %v440, %v439
    %vm539 = vcmask 130048
    %v541 = vsel %vm539, %v125, 0
    %543 = vmatprep.subr.bf16.mxu0 0
    %544 = vmatpush1.bf16.msra.mxu0 %v441
    %545 = vmatprep.subr.bf16.mxu0 0
    %546 = vmatpush1.bf16.msra.mxu0 %v442
    %547 = vmatprep.subr.bf16.mxu0 0
    %548 = vmatpush1.bf16.msra.mxu0 %v443
    %549 = vmatprep.subr.bf16.mxu0 0
    %550 = vmatpush1.bf16.msra.mxu0 %v444
    %551 = vmatprep.subr.bf16.mxu0 0
    %552 = vmatpush1.bf16.msra.mxu0 %v445
    %553 = vmatprep.subr.bf16.mxu0 0
    %554 = vmatpush1.bf16.msra.mxu0 %v446
    %555 = vmatprep.subr.bf16.mxu0 0
    %556 = vmatpush1.bf16.msra.mxu0 %v447
    %557 = vmatprep.subr.bf16.mxu0 0
    %558 = vmatpush1.bf16.msra.mxu0 %v448
    %559 = vmatprep.subr.bf16.mxu0 0
    %560 = vmatpush1.bf16.msra.mxu0 %v449
    %561 = vmatprep.subr.bf16.mxu0 0
    %562 = vmatpush1.bf16.msra.mxu0 %v450
    %563 = vmatprep.subr.bf16.mxu0 0
    %564 = vmatpush1.bf16.msra.mxu0 %v451
    %565 = vmatprep.subr.bf16.mxu0 0
    %566 = vmatpush1.bf16.msra.mxu0 %v452
    %567 = vmatprep.subr.bf16.mxu0 0
    %568 = vmatpush1.bf16.msra.mxu0 %v453
    %569 = vmatprep.subr.bf16.mxu0 0
    %570 = vmatpush1.bf16.msra.mxu0 %v454
    %571 = vmatprep.subr.bf16.mxu0 0
    %572 = vmatpush1.bf16.msra.mxu0 %v455
    %573 = vmatprep.subr.bf16.mxu0 0
    %574 = vmatpush1.bf16.msra.mxu0 %v456
    %575 = vmatprep.mubr.bf16.mxu0 %v120
    %576 = vmatmul.mubr.bf16.gmra.mrb[0].mxu0 %v119
    %v577 = vpop.f32.mrb[0].mxu0
    %v578 = vadd.f32 %v243, %v577
    %v579 = vpop.f32.mrb[0].mxu0
    %v580 = vpop.f32.mrb[0].mxu0
    %v581 = vpop.f32.mrb[0].mxu0
    %582 = vdwg.mxu0
    %583 = vmatprep.subr.bf16.mxu0 0
    %584 = vmatpush1.bf16.msra.mxu0 %v457
    %585 = vmatprep.subr.bf16.mxu0 0
    %586 = vmatpush1.bf16.msra.mxu0 %v458
    %587 = vmatprep.subr.bf16.mxu0 0
    %588 = vmatpush1.bf16.msra.mxu0 %v459
    %589 = vmatprep.subr.bf16.mxu0 0
    %590 = vmatpush1.bf16.msra.mxu0 %v460
    %591 = vmatprep.subr.bf16.mxu0 0
    %592 = vmatpush1.bf16.msra.mxu0 %v461
    %593 = vmatprep.subr.bf16.mxu0 0
    %594 = vmatpush1.bf16.msra.mxu0 %v462
    %595 = vmatprep.subr.bf16.mxu0 0
    %596 = vmatpush1.bf16.msra.mxu0 %v463
    %597 = vmatprep.subr.bf16.mxu0 0
    %598 = vmatpush1.bf16.msra.mxu0 %v464
    %599 = vmatprep.subr.bf16.mxu0 0
    %600 = vmatpush1.bf16.msra.mxu0 %v465
    %601 = vmatprep.subr.bf16.mxu0 0
    %602 = vmatpush1.bf16.msra.mxu0 %v466
    %603 = vmatprep.subr.bf16.mxu0 0
    %604 = vmatpush1.bf16.msra.mxu0 %v467
    %605 = vmatprep.subr.bf16.mxu0 0
    %606 = vmatpush1.bf16.msra.mxu0 %v468
    %607 = vmatprep.subr.bf16.mxu0 0
    %608 = vmatpush1.bf16.msra.mxu0 %v469
    %609 = vmatprep.subr.bf16.mxu0 0
    %610 = vmatpush1.bf16.msra.mxu0 %v470
    %611 = vmatprep.subr.bf16.mxu0 0
    %612 = vmatpush1.bf16.msra.mxu0 %v471
    %613 = vmatprep.subr.bf16.mxu0 0
    %614 = vmatpush1.bf16.msra.mxu0 %v472
    %615 = vmatprep.mubr.bf16.mxu0 %v122
    %616 = vmatmul.mubr.bf16.gmra.mrb[0].mxu0 %v121
    %v617 = vpop.f32.mrb[0].mxu0
    %v618 = vadd.f32 %v578, %v617
    %v619 = vpop.f32.mrb[0].mxu0
    %v620 = vpop.f32.mrb[0].mxu0
    %v621 = vpop.f32.mrb[0].mxu0
    %622 = vdwg.mxu0
    %623 = vmatprep.subr.bf16.mxu0 0
    %624 = vmatpush1.bf16.msra.mxu0 %v473
    %625 = vmatprep.subr.bf16.mxu0 0
    %626 = vmatpush1.bf16.msra.mxu0 %v474
    %627 = vmatprep.subr.bf16.mxu0 0
    %628 = vmatpush1.bf16.msra.mxu0 %v475
    %629 = vmatprep.subr.bf16.mxu0 0
    %630 = vmatpush1.bf16.msra.mxu0 %v476
    %631 = vmatprep.subr.bf16.mxu0 0
    %632 = vmatpush1.bf16.msra.mxu0 %v477
    %633 = vmatprep.subr.bf16.mxu0 0
    %634 = vmatpush1.bf16.msra.mxu0 %v478
    %635 = vmatprep.subr.bf16.mxu0 0
    %636 = vmatpush1.bf16.msra.mxu0 %v479
    %637 = vmatprep.subr.bf16.mxu0 0
    %638 = vmatpush1.bf16.msra.mxu0 %v480
    %639 = vmatprep.subr.bf16.mxu0 0
    %640 = vmatpush1.bf16.msra.mxu0 %v481
    %641 = vmatprep.subr.bf16.mxu0 0
    %642 = vmatpush1.bf16.msra.mxu0 %v482
    %643 = vmatprep.subr.bf16.mxu0 0
    %644 = vmatpush1.bf16.msra.mxu0 %v483
    %645 = vmatprep.subr.bf16.mxu0 0
    %646 = vmatpush1.bf16.msra.mxu0 %v484
    %647 = vmatprep.subr.bf16.mxu0 0
    %648 = vmatpush1.bf16.msra.mxu0 %v485
    %649 = vmatprep.subr.bf16.mxu0 0
    %650 = vmatpush1.bf16.msra.mxu0 %v486
    %651 = vmatprep.subr.bf16.mxu0 0
    %652 = vmatpush1.bf16.msra.mxu0 %v487
    %653 = vmatprep.subr.bf16.mxu0 0
    %654 = vmatpush1.bf16.msra.mxu0 %v488
    %655 = vmatprep.mubr.bf16.mxu0 %v124
    %656 = vmatmul.mubr.bf16.gmra.mrb[0].mxu0 %v123
    %v657 = vpop.f32.mrb[0].mxu0
    %v658 = vadd.f32 %v618, %v657
    %v659 = vpop.f32.mrb[0].mxu0
    %v660 = vpop.f32.mrb[0].mxu0
    %v661 = vpop.f32.mrb[0].mxu0
    %662 = vdwg.mxu0
    %663 = vmatprep.subr.bf16.mxu0 0
    %664 = vmatpush1.bf16.msra.mxu0 %v489
    %665 = vmatprep.subr.bf16.mxu0 0
    %666 = vmatpush1.bf16.msra.mxu0 0
    %667 = vmatprep.subr.bf16.mxu0 0
    %668 = vmatpush1.bf16.msra.mxu0 0
    %669 = vmatprep.subr.bf16.mxu0 0
    %670 = vmatpush1.bf16.msra.mxu0 0
    %671 = vmatprep.subr.bf16.mxu0 0
    %672 = vmatpush1.bf16.msra.mxu0 0
    %673 = vmatprep.subr.bf16.mxu0 0
    %674 = vmatpush1.bf16.msra.mxu0 0
    %675 = vmatprep.subr.bf16.mxu0 0
    %676 = vmatpush1.bf16.msra.mxu0 0
    %677 = vmatprep.subr.bf16.mxu0 0
    %678 = vmatpush1.bf16.msra.mxu0 0
    %679 = vmatprep.subr.bf16.mxu0 0
    %680 = vmatpush1.bf16.msra.mxu0 0
    %681 = vmatprep.subr.bf16.mxu0 0
    %682 = vmatpush1.bf16.msra.mxu0 0
    %683 = vmatprep.subr.bf16.mxu0 0
    %684 = vmatpush1.bf16.msra.mxu0 0
    %685 = vmatprep.subr.bf16.mxu0 0
    %686 = vmatpush1.bf16.msra.mxu0 0
    %687 = vmatprep.subr.bf16.mxu0 0
    %688 = vmatpush1.bf16.msra.mxu0 0
    %689 = vmatprep.subr.bf16.mxu0 0
    %690 = vmatpush1.bf16.msra.mxu0 0
    %691 = vmatprep.subr.bf16.mxu0 0
    %692 = vmatpush1.bf16.msra.mxu0 0
    %693 = vmatprep.subr.bf16.mxu0 0
    %694 = vmatpush1.bf16.msra.mxu0 0
    %695 = vmatprep.mubr.bf16.mxu0 0
    %696 = vmatmul.mubr.bf16.gmra.mrb[0].mxu0 %v541
    %v697 = vpop.f32.mrb[0].mxu0
    %v698 = vadd.f32 %v658, %v697
    %v699 = vpop.f32.mrb[0].mxu0
    %v700 = vpop.f32.mrb[0].mxu0
    %v701 = vpop.f32.mrb[0].mxu0
    %702 = vdwg.mxu0
    %v703 = vld [vmem:[#allocation8] sm:$0xf]
    %v704 = vld [vmem:[#allocation8 + $0x4] sm:$0xf]
    %v705 = vld [vmem:[#allocation8 + $0x8] sm:$0xf]
    %v706 = vld [vmem:[#allocation8 + $0xc] sm:$0xf]
    %v707 = vld [vmem:[#allocation8 + $0x10] sm:$0xf]
    %v708 = vld [vmem:[#allocation8 + $0x14] sm:$0xf]
    %v709 = vld [vmem:[#allocation8 + $0x18] sm:$0xf]
    %v710 = vld [vmem:[#allocation8 + $0x1c] sm:$0xf]
    %v711 = vld [vmem:[#allocation8 + $0x20] sm:$0xf]
    %v712 = vld [vmem:[#allocation8 + $0x24] sm:$0xf]
    %v713 = vld [vmem:[#allocation8 + $0x28] sm:$0xf]
    %v714 = vld [vmem:[#allocation8 + $0x2c] sm:$0xf]
    %v715 = vld [vmem:[#allocation8 + $0x30] sm:$0xf]
    %v716 = vld [vmem:[#allocation8 + $0x34] sm:$0xf]
    %v717 = vld [vmem:[#allocation8 + $0x38] sm:$0xf]
    %v718 = vld [vmem:[#allocation8 + $0x3c] sm:$0xf]
    %v719 = vld [vmem:[#allocation8 + $0x40] sm:$0xf]
    %v720 = vld [vmem:[#allocation8 + $0x44] sm:$0xf]
    %v721 = vld [vmem:[#allocation8 + $0x48] sm:$0xf]
    %v722 = vld [vmem:[#allocation8 + $0x4c] sm:$0xf]
    %v723 = vld [vmem:[#allocation8 + $0x50] sm:$0xf]
    %v724 = vld [vmem:[#allocation8 + $0x54] sm:$0xf]
    %v725 = vld [vmem:[#allocation8 + $0x58] sm:$0xf]
    %v726 = vld [vmem:[#allocation8 + $0x5c] sm:$0xf]
    %v727 = vld [vmem:[#allocation8 + $0x60] sm:$0xf]
    %v728 = vld [vmem:[#allocation8 + $0x64] sm:$0xf]
    %v729 = vld [vmem:[#allocation8 + $0x68] sm:$0xf]
    %v730 = vld [vmem:[#allocation8 + $0x6c] sm:$0xf]
    %v731 = vld [vmem:[#allocation8 + $0x70] sm:$0xf]
    %v732 = vld [vmem:[#allocation8 + $0x74] sm:$0xf]
    %v733 = vld [vmem:[#allocation8 + $0x78] sm:$0xf]
    %v734 = vld [vmem:[#allocation8 + $0x7c] sm:$0xf]
    %v735 = vld [vmem:[#allocation8 + $0x80] sm:$0xf]
    %v736 = vld [vmem:[#allocation8 + $0x84] sm:$0xf]
    %v737 = vld [vmem:[#allocation8 + $0x88] sm:$0xf]
    %v738 = vld [vmem:[#allocation8 + $0x8c] sm:$0xf]
    %v739 = vld [vmem:[#allocation8 + $0x90] sm:$0xf]
    %v740 = vld [vmem:[#allocation8 + $0x94] sm:$0xf]
    %v741 = vld [vmem:[#allocation8 + $0x98] sm:$0xf]
    %v742 = vld [vmem:[#allocation8 + $0x9c] sm:$0xf]
    %v743 = vld [vmem:[#allocation8 + $0xa0] sm:$0xf]
    %v744 = vld [vmem:[#allocation8 + $0xa4] sm:$0xf]
    %v745 = vld [vmem:[#allocation8 + $0xa8] sm:$0xf]
    %v746 = vld [vmem:[#allocation8 + $0xac] sm:$0xf]
    %v747 = vld [vmem:[#allocation8 + $0xb0] sm:$0xf]
    %v748 = vld [vmem:[#allocation8 + $0xb4] sm:$0xf]
    %v749 = vld [vmem:[#allocation8 + $0xb8] sm:$0xf]
    %v750 = vld [vmem:[#allocation8 + $0xbc] sm:$0xf]
    %v751 = vld [vmem:[#allocation8 + $0xc0] sm:$0xf]
    %v752 = vld [vmem:[#allocation8 + $0xc4] sm:$0xf]
    %v753 = vld [vmem:[#allocation8 + $0xc8] sm:$0xf]
    %v754 = vld [vmem:[#allocation8 + $0xcc] sm:$0xf]
    %v755 = vld [vmem:[#allocation8 + $0xd0] sm:$0xf]
    %v756 = vld [vmem:[#allocation8 + $0xd4] sm:$0xf]
    %v757 = vld [vmem:[#allocation8 + $0xd8] sm:$0xf]
    %v758 = vld [vmem:[#allocation8 + $0xdc] sm:$0xf]
    %v759 = vld [vmem:[#allocation8 + $0xe0] sm:$0xf]
    %v760 = vld [vmem:[#allocation8 + $0xe4] sm:$0xf]
    %v761 = vld [vmem:[#allocation8 + $0xe8] sm:$0xf]
    %v762 = vld [vmem:[#allocation8 + $0xec] sm:$0xf]
    %v763 = vld [vmem:[#allocation8 + $0xf0] sm:$0xf]
    %v764 = vld [vmem:[#allocation8 + $0xf4] sm:$0xf]
    %v765 = vld [vmem:[#allocation8 + $0xf8] sm:$0xf]
    %v766 = vld [vmem:[#allocation8 + $0xfc] sm:$0xf]
    %v767 = vld [vmem:[#allocation8 + $0x100] sm:$0xf]
    %v768 = vld [vmem:[#allocation8 + $0x104] sm:$0xf]
    %v769 = vld [vmem:[#allocation8 + $0x108] sm:$0xf]
    %v770 = vld [vmem:[#allocation8 + $0x10c] sm:$0xf]
    %v771 = vld [vmem:[#allocation8 + $0x110] sm:$0xf]
    %v772 = vld [vmem:[#allocation8 + $0x114] sm:$0xf]
    %v773 = vld [vmem:[#allocation8 + $0x118] sm:$0xf]
    %v774 = vld [vmem:[#allocation8 + $0x11c] sm:$0xf]
    %v775 = vld [vmem:[#allocation8 + $0x120] sm:$0xf]
    %v776 = vld [vmem:[#allocation8 + $0x124] sm:$0xf]
    %v777 = vld [vmem:[#allocation8 + $0x128] sm:$0xf]
    %v778 = vld [vmem:[#allocation8 + $0x12c] sm:$0xf]
    %v779 = vld [vmem:[#allocation8 + $0x130] sm:$0xf]
    %v780 = vld [vmem:[#allocation8 + $0x134] sm:$0xf]
    %v781 = vld [vmem:[#allocation8 + $0x138] sm:$0xf]
    %v782 = vld [vmem:[#allocation8 + $0x13c] sm:$0xf]
    %v783 = vld [vmem:[#allocation8 + $0x140] sm:$0xf]
    %v784 = vld [vmem:[#allocation8 + $0x144] sm:$0xf]
    %v785 = vld [vmem:[#allocation8 + $0x148] sm:$0xf]
    %v786 = vld [vmem:[#allocation8 + $0x14c] sm:$0xf]
    %v787 = vld [vmem:[#allocation8 + $0x150] sm:$0xf]
    %v788 = vld [vmem:[#allocation8 + $0x154] sm:$0xf]
    %v789 = vld [vmem:[#allocation8 + $0x158] sm:$0xf]
    %v790 = vld [vmem:[#allocation8 + $0x15c] sm:$0xf]
    %v791 = vld [vmem:[#allocation8 + $0x160] sm:$0xf]
    %v792 = vld [vmem:[#allocation8 + $0x164] sm:$0xf]
    %v793 = vld [vmem:[#allocation8 + $0x168] sm:$0xf]
    %v794 = vld [vmem:[#allocation8 + $0x16c] sm:$0xf]
    %v795 = vld [vmem:[#allocation8 + $0x170] sm:$0xf]
    %v796 = vld [vmem:[#allocation8 + $0x174] sm:$0xf]
    %v797 = vld [vmem:[#allocation8 + $0x178] sm:$0xf]
    %v798 = vld [vmem:[#allocation8 + $0x17c] sm:$0xf]
    %v799 = vld [vmem:[#allocation8 + $0x180] sm:$0xf]
    %v800 = vld [vmem:[#allocation8 + $0x184] sm:$0xf]
    %v801 = vld [vmem:[%s5] sm:$0x1]
    %v803 = vlaneseq
    %v804 = vshrl.u32 %v803, 7
    %v805 = vsub.s32 0, %v804
    %v806 = vrot.slane %v801, %v805
    %v906 = vunpack.c.l.b16 %v703
    %v907 = vunpack.c.l.b16 %v704
    %v908 = vunpack.c.l.b16 %v705
    %v909 = vunpack.c.l.b16 %v706
    %v910 = vunpack.c.l.b16 %v707
    %v911 = vunpack.c.l.b16 %v708
    %v912 = vunpack.c.l.b16 %v709
    %v913 = vunpack.c.l.b16 %v710
    %v914 = vunpack.c.l.b16 %v711
    %v915 = vunpack.c.l.b16 %v712
    %v916 = vunpack.c.l.b16 %v713
    %v917 = vunpack.c.l.b16 %v714
    %v918 = vunpack.c.l.b16 %v715
    %v919 = vunpack.c.l.b16 %v716
    %v920 = vunpack.c.l.b16 %v717
    %v921 = vunpack.c.l.b16 %v718
    %v922 = vunpack.c.l.b16 %v719
    %v923 = vunpack.c.l.b16 %v720
    %v924 = vunpack.c.l.b16 %v721
    %v925 = vunpack.c.l.b16 %v722
    %v926 = vunpack.c.l.b16 %v723
    %v927 = vunpack.c.l.b16 %v724
    %v928 = vunpack.c.l.b16 %v725
    %v929 = vunpack.c.l.b16 %v726
    %v930 = vunpack.c.l.b16 %v727
    %v931 = vunpack.c.l.b16 %v728
    %v932 = vunpack.c.l.b16 %v729
    %v933 = vunpack.c.l.b16 %v730
    %v934 = vunpack.c.l.b16 %v731
    %v935 = vunpack.c.l.b16 %v732
    %v936 = vunpack.c.l.b16 %v733
    %v937 = vunpack.c.l.b16 %v734
    %v938 = vunpack.c.l.b16 %v735
    %v939 = vunpack.c.l.b16 %v736
    %v940 = vunpack.c.l.b16 %v737
    %v941 = vunpack.c.l.b16 %v738
    %v942 = vunpack.c.l.b16 %v739
    %v943 = vunpack.c.l.b16 %v740
    %v944 = vunpack.c.l.b16 %v741
    %v945 = vunpack.c.l.b16 %v742
    %v946 = vunpack.c.l.b16 %v743
    %v947 = vunpack.c.l.b16 %v744
    %v948 = vunpack.c.l.b16 %v745
    %v949 = vunpack.c.l.b16 %v746
    %v950 = vunpack.c.l.b16 %v747
    %v951 = vunpack.c.l.b16 %v748
    %v952 = vunpack.c.l.b16 %v749
    %v953 = vunpack.c.l.b16 %v750
    %v954 = vunpack.c.l.b16 %v751
    %v955 = vunpack.c.l.b16 %v752
    %v956 = vunpack.c.l.b16 %v753
    %v957 = vunpack.c.l.b16 %v754
    %v958 = vunpack.c.l.b16 %v755
    %v959 = vunpack.c.l.b16 %v756
    %v960 = vunpack.c.l.b16 %v757
    %v961 = vunpack.c.l.b16 %v758
    %v962 = vunpack.c.l.b16 %v759
    %v963 = vunpack.c.l.b16 %v760
    %v964 = vunpack.c.l.b16 %v761
    %v965 = vunpack.c.l.b16 %v762
    %v966 = vunpack.c.l.b16 %v763
    %v967 = vunpack.c.l.b16 %v764
    %v968 = vunpack.c.l.b16 %v765
    %v969 = vunpack.c.l.b16 %v766
    %v970 = vunpack.c.l.b16 %v767
    %v971 = vunpack.c.l.b16 %v768
    %v972 = vunpack.c.l.b16 %v769
    %v973 = vunpack.c.l.b16 %v770
    %v974 = vunpack.c.l.b16 %v771
    %v975 = vunpack.c.l.b16 %v772
    %v976 = vunpack.c.l.b16 %v773
    %v977 = vunpack.c.l.b16 %v774
    %v978 = vunpack.c.l.b16 %v775
    %v979 = vunpack.c.l.b16 %v776
    %v980 = vunpack.c.l.b16 %v777
    %v981 = vunpack.c.l.b16 %v778
    %v982 = vunpack.c.l.b16 %v779
    %v983 = vunpack.c.l.b16 %v780
    %v984 = vunpack.c.l.b16 %v781
    %v985 = vunpack.c.l.b16 %v782
    %v986 = vunpack.c.l.b16 %v783
    %v987 = vunpack.c.l.b16 %v784
    %v988 = vunpack.c.l.b16 %v785
    %v989 = vunpack.c.l.b16 %v786
    %v990 = vunpack.c.l.b16 %v787
    %v991 = vunpack.c.l.b16 %v788
    %v992 = vunpack.c.l.b16 %v789
    %v993 = vunpack.c.l.b16 %v790
    %v994 = vunpack.c.l.b16 %v791
    %v995 = vunpack.c.l.b16 %v792
    %v996 = vunpack.c.l.b16 %v793
    %v997 = vunpack.c.l.b16 %v794
    %v998 = vunpack.c.l.b16 %v795
    %v999 = vunpack.c.l.b16 %v796
    %v1000 = vunpack.c.l.b16 %v797
    %v1001 = vunpack.c.l.b16 %v798
    %v1002 = vunpack.c.l.b16 %v799
    %v1003 = vunpack.c.l.b16 %v800
    %v1004 = vpack.c.b16 %v907, %v906
    %v1005 = vpack.c.b16 %v909, %v908
    %v1006 = vpack.c.b16 %v911, %v910
    %v1007 = vpack.c.b16 %v913, %v912
    %v1008 = vpack.c.b16 %v915, %v914
    %v1009 = vpack.c.b16 %v917, %v916
    %v1010 = vpack.c.b16 %v919, %v918
    %v1011 = vpack.c.b16 %v921, %v920
    %v1012 = vpack.c.b16 %v923, %v922
    %v1013 = vpack.c.b16 %v925, %v924
    %v1014 = vpack.c.b16 %v927, %v926
    %v1015 = vpack.c.b16 %v929, %v928
    %v1016 = vpack.c.b16 %v931, %v930
    %v1017 = vpack.c.b16 %v933, %v932
    %v1018 = vpack.c.b16 %v935, %v934
    %v1019 = vpack.c.b16 %v937, %v936
    %v1020 = vpack.c.b16 %v939, %v938
    %v1021 = vpack.c.b16 %v941, %v940
    %v1022 = vpack.c.b16 %v943, %v942
    %v1023 = vpack.c.b16 %v945, %v944
    %v1024 = vpack.c.b16 %v947, %v946
    %v1025 = vpack.c.b16 %v949, %v948
    %v1026 = vpack.c.b16 %v951, %v950
    %v1027 = vpack.c.b16 %v953, %v952
    %v1028 = vpack.c.b16 %v955, %v954
    %v1029 = vpack.c.b16 %v957, %v956
    %v1030 = vpack.c.b16 %v959, %v958
    %v1031 = vpack.c.b16 %v961, %v960
    %v1032 = vpack.c.b16 %v963, %v962
    %v1033 = vpack.c.b16 %v965, %v964
    %v1034 = vpack.c.b16 %v967, %v966
    %v1035 = vpack.c.b16 %v969, %v968
    %v1036 = vpack.c.b16 %v971, %v970
    %v1037 = vpack.c.b16 %v973, %v972
    %v1038 = vpack.c.b16 %v975, %v974
    %v1039 = vpack.c.b16 %v977, %v976
    %v1040 = vpack.c.b16 %v979, %v978
    %v1041 = vpack.c.b16 %v981, %v980
    %v1042 = vpack.c.b16 %v983, %v982
    %v1043 = vpack.c.b16 %v985, %v984
    %v1044 = vpack.c.b16 %v987, %v986
    %v1045 = vpack.c.b16 %v989, %v988
    %v1046 = vpack.c.b16 %v991, %v990
    %v1047 = vpack.c.b16 %v993, %v992
    %v1048 = vpack.c.b16 %v995, %v994
    %v1049 = vpack.c.b16 %v997, %v996
    %v1050 = vpack.c.b16 %v999, %v998
    %v1051 = vpack.c.b16 %v1001, %v1000
    %v1052 = vpack.c.b16 %v1003, %v1002
    %v1103 = vsel %vm539, %v139, 0
    %1105 = vmatprep.subr.bf16.mxu0 0
    %1106 = vmatpush1.bf16.msra.mxu0 %v1004
    %1107 = vmatprep.subr.bf16.mxu0 0
    %1108 = vmatpush1.bf16.msra.mxu0 %v1005
    %1109 = vmatprep.subr.bf16.mxu0 0
    %1110 = vmatpush1.bf16.msra.mxu0 %v1006
    %1111 = vmatprep.subr.bf16.mxu0 0
    %1112 = vmatpush1.bf16.msra.mxu0 %v1007
    %1113 = vmatprep.subr.bf16.mxu0 0
    %1114 = vmatpush1.bf16.msra.mxu0 %v1008
    %1115 = vmatprep.subr.bf16.mxu0 0
    %1116 = vmatpush1.bf16.msra.mxu0 %v1009
    %1117 = vmatprep.subr.bf16.mxu0 0
    %1118 = vmatpush1.bf16.msra.mxu0 %v1010
    %1119 = vmatprep.subr.bf16.mxu0 0
    %1120 = vmatpush1.bf16.msra.mxu0 %v1011
    %1121 = vmatprep.subr.bf16.mxu0 0
    %1122 = vmatpush1.bf16.msra.mxu0 %v1012
    %1123 = vmatprep.subr.bf16.mxu0 0
    %1124 = vmatpush1.bf16.msra.mxu0 %v1013
    %1125 = vmatprep.subr.bf16.mxu0 0
    %1126 = vmatpush1.bf16.msra.mxu0 %v1014
    %1127 = vmatprep.subr.bf16.mxu0 0
    %1128 = vmatpush1.bf16.msra.mxu0 %v1015
    %1129 = vmatprep.subr.bf16.mxu0 0
    %1130 = vmatpush1.bf16.msra.mxu0 %v1016
    %1131 = vmatprep.subr.bf16.mxu0 0
    %1132 = vmatpush1.bf16.msra.mxu0 %v1017
    %1133 = vmatprep.subr.bf16.mxu0 0
    %1134 = vmatpush1.bf16.msra.mxu0 %v1018
    %1135 = vmatprep.subr.bf16.mxu0 0
    %1136 = vmatpush1.bf16.msra.mxu0 %v1019
    %1137 = vmatprep.mubr.bf16.mxu0 %v134
    %1138 = vmatmul.mubr.bf16.gmra.mrb[0].mxu0 %v133
    %v1139 = vpop.f32.mrb[0].mxu0
    %v1140 = vadd.f32 %v806, %v1139
    %v1141 = vpop.f32.mrb[0].mxu0
    %v1142 = vpop.f32.mrb[0].mxu0
    %v1143 = vpop.f32.mrb[0].mxu0
    %1144 = vdwg.mxu0
    %1145 = vmatprep.subr.bf16.mxu0 0
    %1146 = vmatpush1.bf16.msra.mxu0 %v1020
    %1147 = vmatprep.subr.bf16.mxu0 0
    %1148 = vmatpush1.bf16.msra.mxu0 %v1021
    %1149 = vmatprep.subr.bf16.mxu0 0
    %1150 = vmatpush1.bf16.msra.mxu0 %v1022
    %1151 = vmatprep.subr.bf16.mxu0 0
    %1152 = vmatpush1.bf16.msra.mxu0 %v1023
    %1153 = vmatprep.subr.bf16.mxu0 0
    %1154 = vmatpush1.bf16.msra.mxu0 %v1024
    %1155 = vmatprep.subr.bf16.mxu0 0
    %1156 = vmatpush1.bf16.msra.mxu0 %v1025
    %1157 = vmatprep.subr.bf16.mxu0 0
    %1158 = vmatpush1.bf16.msra.mxu0 %v1026
    %1159 = vmatprep.subr.bf16.mxu0 0
    %1160 = vmatpush1.bf16.msra.mxu0 %v1027
    %1161 = vmatprep.subr.bf16.mxu0 0
    %1162 = vmatpush1.bf16.msra.mxu0 %v1028
    %1163 = vmatprep.subr.bf16.mxu0 0
    %1164 = vmatpush1.bf16.msra.mxu0 %v1029
    %1165 = vmatprep.subr.bf16.mxu0 0
    %1166 = vmatpush1.bf16.msra.mxu0 %v1030
    %1167 = vmatprep.subr.bf16.mxu0 0
    %1168 = vmatpush1.bf16.msra.mxu0 %v1031
    %1169 = vmatprep.subr.bf16.mxu0 0
    %1170 = vmatpush1.bf16.msra.mxu0 %v1032
    %1171 = vmatprep.subr.bf16.mxu0 0
    %1172 = vmatpush1.bf16.msra.mxu0 %v1033
    %1173 = vmatprep.subr.bf16.mxu0 0
    %1174 = vmatpush1.bf16.msra.mxu0 %v1034
    %1175 = vmatprep.subr.bf16.mxu0 0
    %1176 = vmatpush1.bf16.msra.mxu0 %v1035
    %1177 = vmatprep.mubr.bf16.mxu0 %v136
    %1178 = vmatmul.mubr.bf16.gmra.mrb[0].mxu0 %v135
    %v1179 = vpop.f32.mrb[0].mxu0
    %v1180 = vadd.f32 %v1140, %v1179
    %v1181 = vpop.f32.mrb[0].mxu0
    %v1182 = vpop.f32.mrb[0].mxu0
    %v1183 = vpop.f32.mrb[0].mxu0
    %1184 = vdwg.mxu0
    %1185 = vmatprep.subr.bf16.mxu0 0
    %1186 = vmatpush1.bf16.msra.mxu0 %v1036
    %1187 = vmatprep.subr.bf16.mxu0 0
    %1188 = vmatpush1.bf16.msra.mxu0 %v1037
    %1189 = vmatprep.subr.bf16.mxu0 0
    %1190 = vmatpush1.bf16.msra.mxu0 %v1038
    %1191 = vmatprep.subr.bf16.mxu0 0
    %1192 = vmatpush1.bf16.msra.mxu0 %v1039
    %1193 = vmatprep.subr.bf16.mxu0 0
    %1194 = vmatpush1.bf16.msra.mxu0 %v1040
    %1195 = vmatprep.subr.bf16.mxu0 0
    %1196 = vmatpush1.bf16.msra.mxu0 %v1041
    %1197 = vmatprep.subr.bf16.mxu0 0
    %1198 = vmatpush1.bf16.msra.mxu0 %v1042
    %1199 = vmatprep.subr.bf16.mxu0 0
    %1200 = vmatpush1.bf16.msra.mxu0 %v1043
    %1201 = vmatprep.subr.bf16.mxu0 0
    %1202 = vmatpush1.bf16.msra.mxu0 %v1044
    %1203 = vmatprep.subr.bf16.mxu0 0
    %1204 = vmatpush1.bf16.msra.mxu0 %v1045
    %1205 = vmatprep.subr.bf16.mxu0 0
    %1206 = vmatpush1.bf16.msra.mxu0 %v1046
    %1207 = vmatprep.subr.bf16.mxu0 0
    %1208 = vmatpush1.bf16.msra.mxu0 %v1047
    %1209 = vmatprep.subr.bf16.mxu0 0
    %1210 = vmatpush1.bf16.msra.mxu0 %v1048
    %1211 = vmatprep.subr.bf16.mxu0 0
    %1212 = vmatpush1.bf16.msra.mxu0 %v1049
    %1213 = vmatprep.subr.bf16.mxu0 0
    %1214 = vmatpush1.bf16.msra.mxu0 %v1050
    %1215 = vmatprep.subr.bf16.mxu0 0
    %1216 = vmatpush1.bf16.msra.mxu0 %v1051
    %1217 = vmatprep.mubr.bf16.mxu0 %v138
    %1218 = vmatmul.mubr.bf16.gmra.mrb[0].mxu0 %v137
    %v1219 = vpop.f32.mrb[0].mxu0
    %v1220 = vadd.f32 %v1180, %v1219
    %v1221 = vpop.f32.mrb[0].mxu0
    %v1222 = vpop.f32.mrb[0].mxu0
    %v1223 = vpop.f32.mrb[0].mxu0
    %1224 = vdwg.mxu0
    %1225 = vmatprep.subr.bf16.mxu0 0
    %1226 = vmatpush1.bf16.msra.mxu0 %v1052
    %1227 = vmatprep.subr.bf16.mxu0 0
    %1228 = vmatpush1.bf16.msra.mxu0 0
    %1229 = vmatprep.subr.bf16.mxu0 0
    %1230 = vmatpush1.bf16.msra.mxu0 0
    %1231 = vmatprep.subr.bf16.mxu0 0
    %1232 = vmatpush1.bf16.msra.mxu0 0
    %1233 = vmatprep.subr.bf16.mxu0 0
    %1234 = vmatpush1.bf16.msra.mxu0 0
    %1235 = vmatprep.subr.bf16.mxu0 0
    %1236 = vmatpush1.bf16.msra.mxu0 0
    %1237 = vmatprep.subr.bf16.mxu0 0
    %1238 = vmatpush1.bf16.msra.mxu0 0
    %1239 = vmatprep.subr.bf16.mxu0 0
    %1240 = vmatpush1.bf16.msra.mxu0 0
    %1241 = vmatprep.subr.bf16.mxu0 0
    %1242 = vmatpush1.bf16.msra.mxu0 0
    %1243 = vmatprep.subr.bf16.mxu0 0
    %1244 = vmatpush1.bf16.msra.mxu0 0
    %1245 = vmatprep.subr.bf16.mxu0 0
    %1246 = vmatpush1.bf16.msra.mxu0 0
    %1247 = vmatprep.subr.bf16.mxu0 0
    %1248 = vmatpush1.bf16.msra.mxu0 0
    %1249 = vmatprep.subr.bf16.mxu0 0
    %1250 = vmatpush1.bf16.msra.mxu0 0
    %1251 = vmatprep.subr.bf16.mxu0 0
    %1252 = vmatpush1.bf16.msra.mxu0 0
    %1253 = vmatprep.subr.bf16.mxu0 0
    %1254 = vmatpush1.bf16.msra.mxu0 0
    %1255 = vmatprep.subr.bf16.mxu0 0
    %1256 = vmatpush1.bf16.msra.mxu0 0
    %1257 = vmatprep.mubr.bf16.mxu0 0
    %1258 = vmatmul.mubr.bf16.gmra.mrb[0].mxu0 %v1103
    %v1259 = vpop.f32.mrb[0].mxu0
    %v1260 = vadd.f32 %v1220, %v1259
    %v1261 = vpop.f32.mrb[0].mxu0
    %v1262 = vpop.f32.mrb[0].mxu0
    %v1263 = vpop.f32.mrb[0].mxu0
    %1264 = vdwg.mxu0
    %v1265 = vpack.c.bf16 %v698, %v698
    %v1266 = vld [vmem:[#allocation10] sm:$0xf]
    %v1267 = vld [vmem:[#allocation10 + $0x4] sm:$0xf]
    %v1268 = vld [vmem:[#allocation10 + $0x8] sm:$0xf]
    %v1269 = vld [vmem:[#allocation10 + $0xc] sm:$0xf]
    %v1270 = vld [vmem:[#allocation10 + $0x10] sm:$0xf]
    %v1271 = vld [vmem:[#allocation10 + $0x14] sm:$0xf]
    %v1272 = vld [vmem:[#allocation10 + $0x18] sm:$0xf]
    %v1273 = vld [vmem:[#allocation10 + $0x1c] sm:$0xf]
    %v1274 = vld [vmem:[#allocation10 + $0x20] sm:$0xf]
    %v1275 = vld [vmem:[#allocation10 + $0x24] sm:$0xf]
    %v1276 = vld [vmem:[#allocation10 + $0x28] sm:$0xf]
    %v1277 = vld [vmem:[#allocation10 + $0x2c] sm:$0xf]
    %v1278 = vld [vmem:[#allocation10 + $0x30] sm:$0xf]
    %v1279 = vld [vmem:[#allocation10 + $0x34] sm:$0xf]
    %v1280 = vld [vmem:[#allocation10 + $0x38] sm:$0xf]
    %v1281 = vld [vmem:[#allocation10 + $0x3c] sm:$0xf]
    %v1282 = vpack.c.bf16 %v1260, %v1260
    %v1283 = vld [vmem:[#allocation11] sm:$0xf]
    %v1284 = vld [vmem:[#allocation11 + $0x4] sm:$0xf]
    %v1285 = vld [vmem:[#allocation11 + $0x8] sm:$0xf]
    %v1286 = vld [vmem:[#allocation11 + $0xc] sm:$0xf]
    %v1287 = vld [vmem:[#allocation11 + $0x10] sm:$0xf]
    %v1288 = vld [vmem:[#allocation11 + $0x14] sm:$0xf]
    %v1289 = vld [vmem:[#allocation11 + $0x18] sm:$0xf]
    %v1290 = vld [vmem:[#allocation11 + $0x1c] sm:$0xf]
    %v1291 = vld [vmem:[#allocation11 + $0x20] sm:$0xf]
    %v1292 = vld [vmem:[#allocation11 + $0x24] sm:$0xf]
    %v1293 = vld [vmem:[#allocation11 + $0x28] sm:$0xf]
    %v1294 = vld [vmem:[#allocation11 + $0x2c] sm:$0xf]
    %v1295 = vld [vmem:[#allocation11 + $0x30] sm:$0xf]
    %v1296 = vld [vmem:[#allocation11 + $0x34] sm:$0xf]
    %v1297 = vld [vmem:[#allocation11 + $0x38] sm:$0xf]
    %v1298 = vld [vmem:[#allocation11 + $0x3c] sm:$0xf]
    %v1315 = vunpack.c.l.b16 %v1283
    %v1316 = vunpack.c.l.b16 %v1284
    %v1317 = vunpack.c.l.b16 %v1285
    %v1318 = vunpack.c.l.b16 %v1286
    %v1319 = vunpack.c.l.b16 %v1287
    %v1320 = vunpack.c.l.b16 %v1288
    %v1321 = vunpack.c.l.b16 %v1289
    %v1322 = vunpack.c.l.b16 %v1290
    %v1323 = vunpack.c.l.b16 %v1291
    %v1324 = vunpack.c.l.b16 %v1292
    %v1325 = vunpack.c.l.b16 %v1293
    %v1326 = vunpack.c.l.b16 %v1294
    %v1327 = vunpack.c.l.b16 %v1295
    %v1328 = vunpack.c.l.b16 %v1296
    %v1329 = vunpack.c.l.b16 %v1297
    %v1330 = vunpack.c.l.b16 %v1298
    %v1331 = vpack.c.b16 %v1316, %v1315
    %v1332 = vpack.c.b16 %v1318, %v1317
    %v1333 = vpack.c.b16 %v1320, %v1319
    %v1334 = vpack.c.b16 %v1322, %v1321
    %v1335 = vpack.c.b16 %v1324, %v1323
    %v1336 = vpack.c.b16 %v1326, %v1325
    %v1337 = vpack.c.b16 %v1328, %v1327
    %v1338 = vpack.c.b16 %v1330, %v1329
    %1347 = vmatprep.subr.bf16.mxu0 0
    %1348 = vmatpush1.bf16.msra.mxu0 %v1331
    %1349 = vmatprep.subr.bf16.mxu0 0
    %1350 = vmatpush1.bf16.msra.mxu0 %v1332
    %1351 = vmatprep.subr.bf16.mxu0 0
    %1352 = vmatpush1.bf16.msra.mxu0 %v1333
    %1353 = vmatprep.subr.bf16.mxu0 0
    %1354 = vmatpush1.bf16.msra.mxu0 %v1334
    %1355 = vmatprep.subr.bf16.mxu0 0
    %1356 = vmatpush1.bf16.msra.mxu0 %v1335
    %1357 = vmatprep.subr.bf16.mxu0 0
    %1358 = vmatpush1.bf16.msra.mxu0 %v1336
    %1359 = vmatprep.subr.bf16.mxu0 0
    %1360 = vmatpush1.bf16.msra.mxu0 %v1337
    %1361 = vmatprep.subr.bf16.mxu0 0
    %1362 = vmatpush1.bf16.msra.mxu0 %v1338
    %1363 = vmatprep.subr.bf16.mxu0 0
    %1364 = vmatpush1.bf16.msra.mxu0 0
    %1365 = vmatprep.subr.bf16.mxu0 0
    %1366 = vmatpush1.bf16.msra.mxu0 0
    %1367 = vmatprep.subr.bf16.mxu0 0
    %1368 = vmatpush1.bf16.msra.mxu0 0
    %1369 = vmatprep.subr.bf16.mxu0 0
    %1370 = vmatpush1.bf16.msra.mxu0 0
    %1371 = vmatprep.subr.bf16.mxu0 0
    %1372 = vmatpush1.bf16.msra.mxu0 0
    %1373 = vmatprep.subr.bf16.mxu0 0
    %1374 = vmatpush1.bf16.msra.mxu0 0
    %1375 = vmatprep.subr.bf16.mxu0 0
    %1376 = vmatpush1.bf16.msra.mxu0 0
    %1377 = vmatprep.subr.bf16.mxu0 0
    %1378 = vmatpush1.bf16.msra.mxu0 0
    %1379 = vmatprep.mubr.bf16.mxu0 0
    %1380 = vmatmul.mubr.bf16.gmra.mrb[0].mxu0 %v1282
    %v1381 = vpop.f32.mrb[0].mxu0
    %v1382 = vadd.f32 0.0, %v1381
    %v1383 = vpop.f32.mrb[0].mxu0
    %v1384 = vpop.f32.mrb[0].mxu0
    %v1385 = vpop.f32.mrb[0].mxu0
    %1386 = vdwg.mxu0
    %v1403 = vunpack.c.l.b16 %v1266
    %v1404 = vunpack.c.l.b16 %v1267
    %v1405 = vunpack.c.l.b16 %v1268
    %v1406 = vunpack.c.l.b16 %v1269
    %v1407 = vunpack.c.l.b16 %v1270
    %v1408 = vunpack.c.l.b16 %v1271
    %v1409 = vunpack.c.l.b16 %v1272
    %v1410 = vunpack.c.l.b16 %v1273
    %v1411 = vunpack.c.l.b16 %v1274
    %v1412 = vunpack.c.l.b16 %v1275
    %v1413 = vunpack.c.l.b16 %v1276
    %v1414 = vunpack.c.l.b16 %v1277
    %v1415 = vunpack.c.l.b16 %v1278
    %v1416 = vunpack.c.l.b16 %v1279
    %v1417 = vunpack.c.l.b16 %v1280
    %v1418 = vunpack.c.l.b16 %v1281
    %v1419 = vpack.c.b16 %v1404, %v1403
    %v1420 = vpack.c.b16 %v1406, %v1405
    %v1421 = vpack.c.b16 %v1408, %v1407
    %v1422 = vpack.c.b16 %v1410, %v1409
    %v1423 = vpack.c.b16 %v1412, %v1411
    %v1424 = vpack.c.b16 %v1414, %v1413
    %v1425 = vpack.c.b16 %v1416, %v1415
    %v1426 = vpack.c.b16 %v1418, %v1417
    %1435 = vmatprep.subr.bf16.mxu0 0
    %1436 = vmatpush1.bf16.msra.mxu0 %v1419
    %1437 = vmatprep.subr.bf16.mxu0 0
    %1438 = vmatpush1.bf16.msra.mxu0 %v1420
    %1439 = vmatprep.subr.bf16.mxu0 0
    %1440 = vmatpush1.bf16.msra.mxu0 %v1421
    %1441 = vmatprep.subr.bf16.mxu0 0
    %1442 = vmatpush1.bf16.msra.mxu0 %v1422
    %1443 = vmatprep.subr.bf16.mxu0 0
    %1444 = vmatpush1.bf16.msra.mxu0 %v1423
    %1445 = vmatprep.subr.bf16.mxu0 0
    %1446 = vmatpush1.bf16.msra.mxu0 %v1424
    %1447 = vmatprep.subr.bf16.mxu0 0
    %1448 = vmatpush1.bf16.msra.mxu0 %v1425
    %1449 = vmatprep.subr.bf16.mxu0 0
    %1450 = vmatpush1.bf16.msra.mxu0 %v1426
    %1451 = vmatprep.subr.bf16.mxu0 0
    %1452 = vmatpush1.bf16.msra.mxu0 0
    %1453 = vmatprep.subr.bf16.mxu0 0
    %1454 = vmatpush1.bf16.msra.mxu0 0
    %1455 = vmatprep.subr.bf16.mxu0 0
    %1456 = vmatpush1.bf16.msra.mxu0 0
    %1457 = vmatprep.subr.bf16.mxu0 0
    %1458 = vmatpush1.bf16.msra.mxu0 0
    %1459 = vmatprep.subr.bf16.mxu0 0
    %1460 = vmatpush1.bf16.msra.mxu0 0
    %1461 = vmatprep.subr.bf16.mxu0 0
    %1462 = vmatpush1.bf16.msra.mxu0 0
    %1463 = vmatprep.subr.bf16.mxu0 0
    %1464 = vmatpush1.bf16.msra.mxu0 0
    %1465 = vmatprep.subr.bf16.mxu0 0
    %1466 = vmatpush1.bf16.msra.mxu0 0
    %1467 = vmatprep.mubr.bf16.mxu0 0
    %1468 = vmatmul.mubr.bf16.gmra.mrb[0].mxu0 %v1265
    %v1469 = vpop.f32.mrb[0].mxu0
    %v1470 = vadd.f32 %v1382, %v1469
    %v1471 = vpop.f32.mrb[0].mxu0
    %v1472 = vpop.f32.mrb[0].mxu0
    %v1473 = vpop.f32.mrb[0].mxu0
    %1474 = vdwg.mxu0
    %v1475 = vld [vmem:[%s8] sm:$0x1]
    %v1477 = vlaneseq
    %v1478 = vshrl.u32 %v1477, 7
    %v1479 = vsub.s32 0, %v1478
    %v1480 = vrot.slane %v1475, %v1479
    %v1482 = vadd.f32 %v1470, %v1480
    %1483 = vst [vmem:[#allocation13] sm:$0xff] %v1482
    // Predicated region
    $region62: #{tpu_custom_call.1} parent=1 // pred_check
      _
    $region63: #{tpu_custom_call.1} parent=1 // pred_check_branch
      %1485 = sbr.rel (0) target = $region65
    $region64: #{tpu_custom_call.1} parent=1 // pred_region
      %s1487 = ssub.s32 128, 128
      %1488 = vsyncadd [#allocation4], %s1487
      %s1490 = sshll.u32 [#allocation13], 4
      %s1491 = int_to_ptr.vmem [resolvable:$true] %s1490
      %1493 = dma.vmem_to_hbm [thread:$0]  %s1491, 128, %s9, [#allocation4]
    $region65: #{tpu_custom_call.1} parent=1 // pred_fallthru
      _
    // Predicated region
    $region66: #{tpu_custom_call.1} parent=1 // pred_check
      _
    $region67: #{tpu_custom_call.1} parent=1 // pred_check_branch
      %1495 = sbr.rel (0) target = $region69
    $region68: #{tpu_custom_call.1} parent=1 // pred_region
      %1496 = dma.done [#allocation4], 128
    $region69: #{tpu_custom_call.1} parent=1 // pred_fallthru
      _
    %1497 = vsyncpa [#allocation3], 1
    %1498 = vsyncpa [#allocation6], 1
    %1499 = vsyncpa [#allocation9], 1
    %1500 = vsyncpa [#allocation12], 1
    %1501 = vsyncpa [#allocation4], 1

</llo_original>
